<compile_context>
chip_gen: v7x
topology: tpu7x:2x2x1
jax: 0.10.0
libtpu: 0.0.40
codegen_flags: <defaults>
</compile_context>

<pallas_src>
import jax
import jax.numpy as jnp
import numpy as np
from jax.experimental import pallas as pl
from jax.experimental.pallas import tpu as pltpu


def _round_up(x, m):
    return ((x + m - 1) // m) * m


def _vmem_tile_budget_bytes():
    # Conservative per-kernel streaming-buffer budget. Stays under every
    # generation's default scoped-VMEM limit (16 MiB v5e, 32 MiB v6e/v7x;
    # v7x has only 64 MiB physical VMEM).
    try:
        cap = pltpu.get_tpu_info().vmem_capacity_bytes
    except Exception:
        cap = 64 * 1024 * 1024  # most conservative (v7x per-TC)
    return min(cap // 8, 12 * 1024 * 1024)


# ----------------------- lang_proj: Linear(768 -> 256) -----------------------

def _lang_proj_kernel(x_ref, w_ref, b_ref, o_ref):
    # x: (TM, 768) f32, w: (768, 256) bf16 [resident], b: (1, 256) f32 [resident]
    # bf16 MXU operands, f32 accumulation (avoids the f32 MXU decomposition).
    acc = jnp.dot(x_ref[...].astype(jnp.bfloat16), w_ref[...],
                  preferred_element_type=jnp.float32)
    o_ref[...] = (acc + b_ref[...]).astype(o_ref.dtype)


def lang_proj(x, w, b, tm_max=512):
    # x: (N, 768), w: (768, 256) bf16, b: (256,) f32
    N, K = x.shape
    Kw, M = w.shape
    assert K == Kw
    # Row tile: sublane-aligned, up to tm_max. No padding: ragged last tile is
    # handled by Pallas (OOB input rows only feed OOB output rows, which are
    # masked on store).
    tm = min(tm_max, _round_up(N, 8))
    out = pl.pallas_call(
        _lang_proj_kernel,
        out_shape=jax.ShapeDtypeStruct((N, M), x.dtype),
        grid=(pl.cdiv(N, tm),),
        in_specs=[
            pl.BlockSpec((tm, K), lambda i: (i, 0)),
            pl.BlockSpec((K, M), lambda i: (0, 0)),   # bf16 weight stays resident
            pl.BlockSpec((1, M), lambda i: (0, 0)),   # f32 bias stays resident
        ],
        out_specs=pl.BlockSpec((tm, M), lambda i: (i, 0)),
        compiler_params=pltpu.CompilerParams(
            dimension_semantics=("parallel",)),
    )(x, w, b.reshape(1, M))
    return out


# -------------------------- semantic_inference kernel ------------------------

def _semantic_inference_kernel(cls_ref, pred_ref, o_ref):
    # cls_ref:  (1, Q, C)    [tiny, resident across the HW axis]
    # pred_ref: (1, Q, THW)
    # o_ref:    (1, C-1, THW)
    # torch: F.softmax(mask_cls, dim=1) -> softmax over the query axis.
    # Recomputed per tile (trivial) so there is no cross-tile state and both
    # grid axes can be "parallel" (v7x megacore at small batch).
    cls = cls_ref[0].astype(jnp.float32)               # (Q, C)
    m = jnp.max(cls, axis=0, keepdims=True)
    e = jnp.exp(cls - m)
    sm = e / jnp.sum(e, axis=0, keepdims=True)         # (Q, C)
    # Drop class 0 in-kernel (torch [..., 1:]); cheap sublane slice on (C, Q).
    pt = sm.T[1:].astype(jnp.bfloat16)                 # (C-1, Q)

    # Sigmoid in f32 in-register (v5e VPU/EUP have no bf16 datapath), then
    # bf16 for the MXU RHS; accumulate in f32.
    mp = jax.nn.sigmoid(pred_ref[0].astype(jnp.float32)).astype(jnp.bfloat16)  # (Q, THW)
    out = jnp.dot(pt, mp, preferred_element_type=jnp.float32)                  # (C-1, THW)
    o_ref[0] = out.astype(o_ref.dtype)


def _pick_thw(Q, c_out, HW, pred_bytes, out_bytes):
    budget = _vmem_tile_budget_bytes()
    # Streaming buffers are double-buffered: pred (Q x thw) + out (c_out x thw).
    per_col = 2 * (Q * pred_bytes + c_out * out_bytes)
    cap = max(budget // max(per_col, 1), 128)
    cap = (cap // 128) * 128
    if cap >= HW:
        return HW                      # single lane-dense tile (== full dim)
    return max(cap, 128)               # multiple of 128; ragged last tile OK


def semantic_inference(mask_cls, mask_pred):
    # mask_cls: (B, Q, C), mask_pred: (B, Q, H, W)
    # For best HBM efficiency feed mask_pred as bf16 from upstream; the kernel
    # keeps sigmoid/softmax/accumulation in f32 either way.
    B, Q, C = mask_cls.shape
    Bp, Qp, H, W = mask_pred.shape
    assert B == Bp and Q == Qp
    HW = H * W
    pred_flat = mask_pred.reshape(B, Q, HW)            # contiguous reshape, no copy
    out_dtype = mask_pred.dtype

    thw = _pick_thw(Q, C - 1, HW,
                    pred_bytes=pred_flat.dtype.itemsize,
                    out_bytes=jnp.dtype(out_dtype).itemsize)

    out = pl.pallas_call(
        _semantic_inference_kernel,
        out_shape=jax.ShapeDtypeStruct((B, C - 1, HW), out_dtype),
        grid=(B, pl.cdiv(HW, thw)),
        in_specs=[
            pl.BlockSpec((1, Q, C), lambda b, t: (b, 0, 0)),     # cls resident over HW
            pl.BlockSpec((1, Q, thw), lambda b, t: (b, 0, t)),
        ],
        out_specs=pl.BlockSpec((1, C - 1, thw), lambda b, t: (b, 0, t)),
        compiler_params=pltpu.CompilerParams(
            # No cross-tile state -> both axes parallel (uses both TCs on v7x).
            dimension_semantics=("parallel", "parallel")),
    )(mask_cls, pred_flat)

    return out.reshape(B, C - 1, H, W)


# ------------------------------ wrapper "module" ------------------------------

class WrapperModelPallas:
    """Holds the deterministic lang_proj parameters and exposes the Pallas ops."""

    def __init__(self, key):
        k_w, k_b = jax.random.split(key)
        # nn.Linear(768, 256): weight (256, 768), bias (256,) in torch.
        # Transposed weight (768, 256) stored bf16 (resident MXU operand);
        # bias kept f32 (added to the f32 accumulator, tiny).
        self.w = (jax.random.normal(k_w, (768, 256), jnp.float32) * 0.02
                  ).astype(jnp.bfloat16)
        self.b = jax.random.normal(k_b, (256,), jnp.float32) * 0.02

    def lang_proj(self, x):
        # x: (..., 768) -> (..., 256)
        lead = x.shape[:-1]
        y = lang_proj(x.reshape(-1, 768), self.w, self.b)
        return y.reshape(*lead, 256)

    def semantic_inference(self, mask_cls, mask_pred):
        return semantic_inference(mask_cls, mask_pred)


# ---------------------------------- main --------------------------------------

if __name__ == "__main__":
    key = jax.random.PRNGKey(0)
    k_model, k_feat, k_cls, k_pred = jax.random.split(key, 4)

    model = WrapperModelPallas(k_model)

    # Small deterministic inputs:
    B, L = 2, 8          # batch, sequence length for language features
    Q, C = 8, 4          # queries, classes (C includes the background slot)
    H, W = 16, 16        # spatial

    lang_feats = jax.random.normal(k_feat, (B, L, 768), jnp.float32)
    mask_cls = jax.random.normal(k_cls, (B, Q, C), jnp.float32)
    mask_pred = jax.random.normal(k_pred, (B, Q, H, W), jnp.float32)

    # Run the Pallas kernels.
    proj_out = model.lang_proj(lang_feats)                     # (B, L, 256)
    semseg = model.semantic_inference(mask_cls, mask_pred)     # (B, C-1, H, W)
    jax.block_until_ready(proj_out)
    jax.block_until_ready(semseg)

    # Pure-JAX f32 references for correctness (bf16 MXU operands -> loosened tol).
    w_f32 = model.w.astype(jnp.float32)
    proj_ref = lang_feats @ w_f32 + model.b
    sm_ref = jax.nn.softmax(mask_cls, axis=1)[..., 1:]
    sig_ref = jax.nn.sigmoid(mask_pred)
    semseg_ref = jnp.einsum('bqc,bqhw->bchw', sm_ref, sig_ref)

    np.testing.assert_allclose(np.asarray(proj_out), np.asarray(proj_ref),
                               rtol=2e-2, atol=2e-2)
    np.testing.assert_allclose(np.asarray(semseg), np.asarray(semseg_ref),
                               rtol=2e-2, atol=2e-2)

    print("KERNEL_OK")
</pallas_src>

<mosaic_0001>
module attributes {stable_mosaic.version = 11 : i64} {
  func.func @_lang_proj_kernel(%arg0: i32, %arg1: memref<16x768xf32, #tpu.memory_space<vmem>>, %arg2: memref<768x256xbf16, #tpu.memory_space<vmem>>, %arg3: memref<1x256xf32, #tpu.memory_space<vmem>>, %arg4: memref<16x256xf32, #tpu.memory_space<vmem>>) attributes {dimension_semantics = [#tpu.dimension_semantics<parallel>], iteration_bounds = array<i64: 1>, scalar_prefetch = 0 : i64, scratch_operands = 0 : i64, tpu.core_type = #tpu.core_type<tc>, window_params = [{transform_indices = @transform_0, window_bounds = array<i64: 16, 768>}, {pipeline_mode = #tpu.pipeline_mode<synchronous>, transform_indices = @transform_1, window_bounds = array<i64: 768, 256>}, {pipeline_mode = #tpu.pipeline_mode<synchronous>, transform_indices = @transform_2, window_bounds = array<i64: 1, 256>}, {transform_indices = @transform_3, window_bounds = array<i64: 16, 256>}]} {
    %c0 = arith.constant 0 : index
    %c0_0 = arith.constant 0 : index
    %0 = vector.load %arg1[%c0, %c0_0] : memref<16x768xf32, #tpu.memory_space<vmem>>, vector<16x768xf32>
    %1 = arith.truncf %0 : vector<16x768xf32> to vector<16x768xbf16>
    %c0_1 = arith.constant 0 : index
    %c0_2 = arith.constant 0 : index
    %2 = vector.load %arg2[%c0_1, %c0_2] : memref<768x256xbf16, #tpu.memory_space<vmem>>, vector<768x256xbf16>
    %cst = arith.constant dense<0.000000e+00> : vector<16x256xf32>
    %3 = tpu.matmul %1, %2, %cst {dimension_numbers = #tpu.dot_dimension_numbers<[1], [0], [0], [1], [0, 0, 1, 1], [], []>} : vector<16x768xbf16>, vector<768x256xbf16>, vector<16x256xf32> -> vector<16x256xf32>
    %c0_3 = arith.constant 0 : index
    %c0_4 = arith.constant 0 : index
    %4 = vector.load %arg3[%c0_3, %c0_4] : memref<1x256xf32, #tpu.memory_space<vmem>>, vector<1x256xf32>
    %5 = vector.broadcast %4 : vector<1x256xf32> to vector<16x256xf32>
    %6 = arith.addf %3, %5 : vector<16x256xf32>
    %c0_5 = arith.constant 0 : index
    %c0_6 = arith.constant 0 : index
    %7 = vector.load %arg4[%c0_5, %c0_6] : memref<16x256xf32, #tpu.memory_space<vmem>>, vector<16x256xf32>
    tpu.vector_store %arg4[%c0_5, %c0_6], %6 {strides = array<i32>} : memref<16x256xf32, #tpu.memory_space<vmem>>, vector<16x256xf32>,
    return
  }
  func.func @transform_0(%arg0: i32) -> (i32, i32) {
    %c0_i32 = arith.constant 0 : i32
    %c0_i32_0 = arith.constant 0 : i32
    return %arg0, %c0_i32 : i32, i32
  }
  func.func @transform_1(%arg0: i32) -> (i32, i32) {
    %c0_i32 = arith.constant 0 : i32
    %c0_i32_0 = arith.constant 0 : i32
    %c0_i32_1 = arith.constant 0 : i32
    return %c0_i32, %c0_i32_0 : i32, i32
  }
  func.func @transform_2(%arg0: i32) -> (i32, i32) {
    %c0_i32 = arith.constant 0 : i32
    %c0_i32_0 = arith.constant 0 : i32
    %c0_i32_1 = arith.constant 0 : i32
    return %c0_i32, %c0_i32_0 : i32, i32
  }
  func.func @transform_3(%arg0: i32) -> (i32, i32) {
    %c0_i32 = arith.constant 0 : i32
    %c0_i32_0 = arith.constant 0 : i32
    return %arg0, %c0_i32 : i32, i32
  }
}

</mosaic_0001>

<llo_original>
// kernel: tpu_custom_call.1
$region0: #{tpu_custom_call.1}
  #allocation0 [shape = 'u32[]', space=smem, size = 0x4, offset = 0x4, fixed_abs, tag = 'smem constant byte address 0x4 - core index']
  #allocation1 [shape = 'u32[144,128]{1,0:T(1,128)}', space=vmem, size = 0x12000, scoped, tag = 'internal scratch']
  %s0 = inlined_call_operand.hbm [shape: f32[16,768], index: 0, kind: input, shape index: {}]
  %s1 = inlined_call_operand.hbm [shape: bf16[768,256], index: 1, kind: input, shape index: {}]
  %s2 = inlined_call_operand.vmem [shape: f32[1,256], index: 2, kind: input, shape index: {}]
  %s3 = inlined_call_operand.hbm [shape: f32[16,256], index: 3, kind: output, shape index: {}]
  %s4 = sld [smem:[#allocation0]]
  $region30: #{tpu_custom_call.1} parent=0
    _
  %s6 = ssub.s32 1, %s4
  %s7 = scalar_select 0, %s6, %s4
  $region1: #{tpu_custom_call.1} parent=0
    #allocation2 [shape = 'u8[49152]{0}', space=vmem, size = 0xc000, scoped, tag = 'input window, operand 0, single buffered']
    #allocation3 [shape = 's32[1]{0}', space=sflag, size = 0x4, scoped, tag = 'scoped memory for tpu_custom_call.1']
    #allocation4 [shape = 's32[1]{0}', space=sflag, size = 0x4, scoped, tag = 'scoped memory for tpu_custom_call.1']
    #allocation5 [shape = 'u8[393216]{0}', space=vmem, size = 0x60000, scoped, tag = 'input window, operand 1, single buffered']
    #allocation6 [shape = 's32[1]{0}', space=sflag, size = 0x4, scoped, tag = 'scoped memory for tpu_custom_call.1']
    #allocation7 [shape = 'u8[16384]{0}', space=vmem, size = 0x4000, scoped, tag = 'output window, operand 0, single buffered']
    %8 = vsyncpa [#allocation3], 0
    %9 = vsyncpa [#allocation6], 0
    %10 = vsyncpa [#allocation4], 0
    // Predicated region
    $region2: #{tpu_custom_call.1} parent=1 // pred_check
      _
    $region3: #{tpu_custom_call.1} parent=1 // pred_check_branch
      %12 = sbr.rel (0) target = $region5
    $region4: #{tpu_custom_call.1} parent=1 // pred_region
      %s14 = ssub.s32 1536, 1536
      %15 = vsyncadd [#allocation3], %s14
      %s16 = sshll.u32 [#allocation2], 4
      %s17 = int_to_ptr.vmem [resolvable:$true] %s16
      %22 = dma.hbm_to_vmem [thread:$0]  %s0, 1536, %s17, [#allocation3], 768, 768, 48
    $region5: #{tpu_custom_call.1} parent=1 // pred_fallthru
      _
    // Predicated region
    $region6: #{tpu_custom_call.1} parent=1 // pred_check
      _
    $region7: #{tpu_custom_call.1} parent=1 // pred_check_branch
      %24 = sbr.rel (0) target = $region9
    $region8: #{tpu_custom_call.1} parent=1 // pred_region
      %s26 = ssub.s32 12288, 12288
      %27 = vsyncadd [#allocation6], %s26
      %s28 = sshll.u32 [#allocation5], 4
      %s29 = int_to_ptr.vmem [resolvable:$true] %s28
      %34 = dma.hbm_to_vmem [thread:$0]  %s1, 12288, %s29, [#allocation6], 128, 128, 8
    $region9: #{tpu_custom_call.1} parent=1 // pred_fallthru
      _
    // Predicated region
    $region10: #{tpu_custom_call.1} parent=1 // pred_check
      _
    $region11: #{tpu_custom_call.1} parent=1 // pred_check_branch
      %36 = sbr.rel (0) target = $region13
    $region12: #{tpu_custom_call.1} parent=1 // pred_region
      _
    $region13: #{tpu_custom_call.1} parent=1 // pred_fallthru
      _
    // Predicated region
    $region14: #{tpu_custom_call.1} parent=1 // pred_check
      _
    $region15: #{tpu_custom_call.1} parent=1 // pred_check_branch
      %38 = sbr.rel (0) target = $region17
    $region16: #{tpu_custom_call.1} parent=1 // pred_region
      %39 = dma.done [#allocation3], 1536
    $region17: #{tpu_custom_call.1} parent=1 // pred_fallthru
      _
    // Predicated region
    $region18: #{tpu_custom_call.1} parent=1 // pred_check
      _
    $region19: #{tpu_custom_call.1} parent=1 // pred_check_branch
      %41 = sbr.rel (0) target = $region21
    $region20: #{tpu_custom_call.1} parent=1 // pred_region
      %42 = dma.done [#allocation6], 12288
    $region21: #{tpu_custom_call.1} parent=1 // pred_fallthru
      _
    %v43 = vld [vmem:[#allocation2] sm:$0xff]
    %v44 = vld [vmem:[#allocation2 + $0x8] sm:$0xff]
    %v45 = vld [vmem:[#allocation2 + $0x10] sm:$0xff]
    %v46 = vld [vmem:[#allocation2 + $0x18] sm:$0xff]
    %v47 = vld [vmem:[#allocation2 + $0x20] sm:$0xff]
    %v48 = vld [vmem:[#allocation2 + $0x28] sm:$0xff]
    %v49 = vld [vmem:[#allocation2 + $0x30] sm:$0xff]
    %v50 = vld [vmem:[#allocation2 + $0x38] sm:$0xff]
    %v51 = vld [vmem:[#allocation2 + $0x40] sm:$0xff]
    %v52 = vld [vmem:[#allocation2 + $0x48] sm:$0xff]
    %v53 = vld [vmem:[#allocation2 + $0x50] sm:$0xff]
    %v54 = vld [vmem:[#allocation2 + $0x58] sm:$0xff]
    %v55 = vpack.c.bf16 %v49, %v43
    %v56 = vpack.c.bf16 %v50, %v44
    %v57 = vpack.c.bf16 %v51, %v45
    %v58 = vpack.c.bf16 %v52, %v46
    %v59 = vpack.c.bf16 %v53, %v47
    %v60 = vpack.c.bf16 %v54, %v48
    %v61 = vld [vmem:[#allocation5] sm:$0xff]
    %v62 = vld [vmem:[#allocation5 + $0x8] sm:$0xff]
    %v63 = vld [vmem:[#allocation5 + $0x10] sm:$0xff]
    %v64 = vld [vmem:[#allocation5 + $0x18] sm:$0xff]
    %v65 = vld [vmem:[#allocation5 + $0x20] sm:$0xff]
    %v66 = vld [vmem:[#allocation5 + $0x28] sm:$0xff]
    %v67 = vld [vmem:[#allocation5 + $0x30] sm:$0xff]
    %v68 = vld [vmem:[#allocation5 + $0x38] sm:$0xff]
    %v69 = vld [vmem:[#allocation5 + $0x40] sm:$0xff]
    %v70 = vld [vmem:[#allocation5 + $0x48] sm:$0xff]
    %v71 = vld [vmem:[#allocation5 + $0x50] sm:$0xff]
    %v72 = vld [vmem:[#allocation5 + $0x58] sm:$0xff]
    %v73 = vld [vmem:[#allocation5 + $0x60] sm:$0xff]
    %v74 = vld [vmem:[#allocation5 + $0x68] sm:$0xff]
    %v75 = vld [vmem:[#allocation5 + $0x70] sm:$0xff]
    %v76 = vld [vmem:[#allocation5 + $0x78] sm:$0xff]
    %v77 = vld [vmem:[#allocation5 + $0x80] sm:$0xff]
    %v78 = vld [vmem:[#allocation5 + $0x88] sm:$0xff]
    %v79 = vld [vmem:[#allocation5 + $0x90] sm:$0xff]
    %v80 = vld [vmem:[#allocation5 + $0x98] sm:$0xff]
    %v81 = vld [vmem:[#allocation5 + $0xa0] sm:$0xff]
    %v82 = vld [vmem:[#allocation5 + $0xa8] sm:$0xff]
    %v83 = vld [vmem:[#allocation5 + $0xb0] sm:$0xff]
    %v84 = vld [vmem:[#allocation5 + $0xb8] sm:$0xff]
    %v85 = vld [vmem:[#allocation5 + $0xc0] sm:$0xff]
    %v86 = vld [vmem:[#allocation5 + $0xc8] sm:$0xff]
    %v87 = vld [vmem:[#allocation5 + $0xd0] sm:$0xff]
    %v88 = vld [vmem:[#allocation5 + $0xd8] sm:$0xff]
    %v89 = vld [vmem:[#allocation5 + $0xe0] sm:$0xff]
    %v90 = vld [vmem:[#allocation5 + $0xe8] sm:$0xff]
    %v91 = vld [vmem:[#allocation5 + $0xf0] sm:$0xff]
    %v92 = vld [vmem:[#allocation5 + $0xf8] sm:$0xff]
    %v93 = vld [vmem:[#allocation5 + $0x100] sm:$0xff]
    %v94 = vld [vmem:[#allocation5 + $0x108] sm:$0xff]
    %v95 = vld [vmem:[#allocation5 + $0x110] sm:$0xff]
    %v96 = vld [vmem:[#allocation5 + $0x118] sm:$0xff]
    %v97 = vld [vmem:[#allocation5 + $0x120] sm:$0xff]
    %v98 = vld [vmem:[#allocation5 + $0x128] sm:$0xff]
    %v99 = vld [vmem:[#allocation5 + $0x130] sm:$0xff]
    %v100 = vld [vmem:[#allocation5 + $0x138] sm:$0xff]
    %v101 = vld [vmem:[#allocation5 + $0x140] sm:$0xff]
    %v102 = vld [vmem:[#allocation5 + $0x148] sm:$0xff]
    %v103 = vld [vmem:[#allocation5 + $0x150] sm:$0xff]
    %v104 = vld [vmem:[#allocation5 + $0x158] sm:$0xff]
    %v105 = vld [vmem:[#allocation5 + $0x160] sm:$0xff]
    %v106 = vld [vmem:[#allocation5 + $0x168] sm:$0xff]
    %v107 = vld [vmem:[#allocation5 + $0x170] sm:$0xff]
    %v108 = vld [vmem:[#allocation5 + $0x178] sm:$0xff]
    %v109 = vld [vmem:[#allocation5 + $0x180] sm:$0xff]
    %v110 = vld [vmem:[#allocation5 + $0x188] sm:$0xff]
    %v111 = vld [vmem:[#allocation5 + $0x190] sm:$0xff]
    %v112 = vld [vmem:[#allocation5 + $0x198] sm:$0xff]
    %v113 = vld [vmem:[#allocation5 + $0x1a0] sm:$0xff]
    %v114 = vld [vmem:[#allocation5 + $0x1a8] sm:$0xff]
    %v115 = vld [vmem:[#allocation5 + $0x1b0] sm:$0xff]
    %v116 = vld [vmem:[#allocation5 + $0x1b8] sm:$0xff]
    %v117 = vld [vmem:[#allocation5 + $0x1c0] sm:$0xff]
    %v118 = vld [vmem:[#allocation5 + $0x1c8] sm:$0xff]
    %v119 = vld [vmem:[#allocation5 + $0x1d0] sm:$0xff]
    %v120 = vld [vmem:[#allocation5 + $0x1d8] sm:$0xff]
    %v121 = vld [vmem:[#allocation5 + $0x1e0] sm:$0xff]
    %v122 = vld [vmem:[#allocation5 + $0x1e8] sm:$0xff]
    %v123 = vld [vmem:[#allocation5 + $0x1f0] sm:$0xff]
    %v124 = vld [vmem:[#allocation5 + $0x1f8] sm:$0xff]
    %v125 = vld [vmem:[#allocation5 + $0x200] sm:$0xff]
    %v126 = vld [vmem:[#allocation5 + $0x208] sm:$0xff]
    %v127 = vld [vmem:[#allocation5 + $0x210] sm:$0xff]
    %v128 = vld [vmem:[#allocation5 + $0x218] sm:$0xff]
    %v129 = vld [vmem:[#allocation5 + $0x220] sm:$0xff]
    %v130 = vld [vmem:[#allocation5 + $0x228] sm:$0xff]
    %v131 = vld [vmem:[#allocation5 + $0x230] sm:$0xff]
    %v132 = vld [vmem:[#allocation5 + $0x238] sm:$0xff]
    %v133 = vld [vmem:[#allocation5 + $0x240] sm:$0xff]
    %v134 = vld [vmem:[#allocation5 + $0x248] sm:$0xff]
    %v135 = vld [vmem:[#allocation5 + $0x250] sm:$0xff]
    %v136 = vld [vmem:[#allocation5 + $0x258] sm:$0xff]
    %v137 = vld [vmem:[#allocation5 + $0x260] sm:$0xff]
    %v138 = vld [vmem:[#allocation5 + $0x268] sm:$0xff]
    %v139 = vld [vmem:[#allocation5 + $0x270] sm:$0xff]
    %v140 = vld [vmem:[#allocation5 + $0x278] sm:$0xff]
    %v141 = vld [vmem:[#allocation5 + $0x280] sm:$0xff]
    %v142 = vld [vmem:[#allocation5 + $0x288] sm:$0xff]
    %v143 = vld [vmem:[#allocation5 + $0x290] sm:$0xff]
    %v144 = vld [vmem:[#allocation5 + $0x298] sm:$0xff]
    %v145 = vld [vmem:[#allocation5 + $0x2a0] sm:$0xff]
    %v146 = vld [vmem:[#allocation5 + $0x2a8] sm:$0xff]
    %v147 = vld [vmem:[#allocation5 + $0x2b0] sm:$0xff]
    %v148 = vld [vmem:[#allocation5 + $0x2b8] sm:$0xff]
    %v149 = vld [vmem:[#allocation5 + $0x2c0] sm:$0xff]
    %v150 = vld [vmem:[#allocation5 + $0x2c8] sm:$0xff]
    %v151 = vld [vmem:[#allocation5 + $0x2d0] sm:$0xff]
    %v152 = vld [vmem:[#allocation5 + $0x2d8] sm:$0xff]
    %v153 = vld [vmem:[#allocation5 + $0x2e0] sm:$0xff]
    %v154 = vld [vmem:[#allocation5 + $0x2e8] sm:$0xff]
    %v155 = vld [vmem:[#allocation5 + $0x2f0] sm:$0xff]
    %v156 = vld [vmem:[#allocation5 + $0x2f8] sm:$0xff]
    %v157 = vld [vmem:[%s2] sm:$0x3]
    %v159 = vlaneseq
    %v160 = vshrl.u32 %v159, 7
    %v161 = vsub.s32 0, %v160
    %v162 = vrot.slane %v157, %v161
    %v163 = vlaneseq
    %v164 = vshrl.u32 %v163, 7
    %v165 = vsub.s32 1, %v164
    %v166 = vrot.slane %v157, %v165
    %v265 = vunpack.c.l.b16 %v61
    %v266 = vunpack.c.h.b16 %v61
    %v267 = vunpack.c.l.b16 %v62
    %v268 = vunpack.c.h.b16 %v62
    %v269 = vunpack.c.l.b16 %v63
    %v270 = vunpack.c.h.b16 %v63
    %v271 = vunpack.c.l.b16 %v64
    %v272 = vunpack.c.h.b16 %v64
    %v273 = vunpack.c.l.b16 %v65
    %v274 = vunpack.c.h.b16 %v65
    %v275 = vunpack.c.l.b16 %v66
    %v276 = vunpack.c.h.b16 %v66
    %v277 = vunpack.c.l.b16 %v67
    %v278 = vunpack.c.h.b16 %v67
    %v279 = vunpack.c.l.b16 %v68
    %v280 = vunpack.c.h.b16 %v68
    %v281 = vunpack.c.l.b16 %v69
    %v282 = vunpack.c.h.b16 %v69
    %v283 = vunpack.c.l.b16 %v70
    %v284 = vunpack.c.h.b16 %v70
    %v285 = vunpack.c.l.b16 %v71
    %v286 = vunpack.c.h.b16 %v71
    %v287 = vunpack.c.l.b16 %v72
    %v288 = vunpack.c.h.b16 %v72
    %v289 = vunpack.c.l.b16 %v73
    %v290 = vunpack.c.h.b16 %v73
    %v291 = vunpack.c.l.b16 %v74
    %v292 = vunpack.c.h.b16 %v74
    %v293 = vunpack.c.l.b16 %v75
    %v294 = vunpack.c.h.b16 %v75
    %v295 = vunpack.c.l.b16 %v76
    %v296 = vunpack.c.h.b16 %v76
    %v297 = vunpack.c.l.b16 %v77
    %v298 = vunpack.c.h.b16 %v77
    %v299 = vunpack.c.l.b16 %v78
    %v300 = vunpack.c.h.b16 %v78
    %v301 = vunpack.c.l.b16 %v79
    %v302 = vunpack.c.h.b16 %v79
    %v303 = vunpack.c.l.b16 %v80
    %v304 = vunpack.c.h.b16 %v80
    %v305 = vunpack.c.l.b16 %v81
    %v306 = vunpack.c.h.b16 %v81
    %v307 = vunpack.c.l.b16 %v82
    %v308 = vunpack.c.h.b16 %v82
    %v309 = vunpack.c.l.b16 %v83
    %v310 = vunpack.c.h.b16 %v83
    %v311 = vunpack.c.l.b16 %v84
    %v312 = vunpack.c.h.b16 %v84
    %v313 = vunpack.c.l.b16 %v85
    %v314 = vunpack.c.h.b16 %v85
    %v315 = vunpack.c.l.b16 %v86
    %v316 = vunpack.c.h.b16 %v86
    %v317 = vunpack.c.l.b16 %v87
    %v318 = vunpack.c.h.b16 %v87
    %v319 = vunpack.c.l.b16 %v88
    %v320 = vunpack.c.h.b16 %v88
    %v321 = vunpack.c.l.b16 %v89
    %v322 = vunpack.c.h.b16 %v89
    %v323 = vunpack.c.l.b16 %v90
    %v324 = vunpack.c.h.b16 %v90
    %v325 = vunpack.c.l.b16 %v91
    %v326 = vunpack.c.h.b16 %v91
    %v327 = vunpack.c.l.b16 %v92
    %v328 = vunpack.c.h.b16 %v92
    %v329 = vunpack.c.l.b16 %v93
    %v330 = vunpack.c.h.b16 %v93
    %v331 = vunpack.c.l.b16 %v94
    %v332 = vunpack.c.h.b16 %v94
    %v333 = vunpack.c.l.b16 %v95
    %v334 = vunpack.c.h.b16 %v95
    %v335 = vunpack.c.l.b16 %v96
    %v336 = vunpack.c.h.b16 %v96
    %v337 = vunpack.c.l.b16 %v97
    %v338 = vunpack.c.h.b16 %v97
    %v339 = vunpack.c.l.b16 %v98
    %v340 = vunpack.c.h.b16 %v98
    %v341 = vunpack.c.l.b16 %v99
    %v342 = vunpack.c.h.b16 %v99
    %v343 = vunpack.c.l.b16 %v100
    %v344 = vunpack.c.h.b16 %v100
    %v345 = vunpack.c.l.b16 %v101
    %v346 = vunpack.c.h.b16 %v101
    %v347 = vunpack.c.l.b16 %v102
    %v348 = vunpack.c.h.b16 %v102
    %v349 = vunpack.c.l.b16 %v103
    %v350 = vunpack.c.h.b16 %v103
    %v351 = vunpack.c.l.b16 %v104
    %v352 = vunpack.c.h.b16 %v104
    %v353 = vunpack.c.l.b16 %v105
    %v354 = vunpack.c.h.b16 %v105
    %v355 = vunpack.c.l.b16 %v106
    %v356 = vunpack.c.h.b16 %v106
    %v357 = vunpack.c.l.b16 %v107
    %v358 = vunpack.c.h.b16 %v107
    %v359 = vunpack.c.l.b16 %v108
    %v360 = vunpack.c.h.b16 %v108
    %v361 = vunpack.c.l.b16 %v109
    %v362 = vunpack.c.h.b16 %v109
    %v363 = vunpack.c.l.b16 %v110
    %v364 = vunpack.c.h.b16 %v110
    %v365 = vunpack.c.l.b16 %v111
    %v366 = vunpack.c.h.b16 %v111
    %v367 = vunpack.c.l.b16 %v112
    %v368 = vunpack.c.h.b16 %v112
    %v369 = vunpack.c.l.b16 %v113
    %v370 = vunpack.c.h.b16 %v113
    %v371 = vunpack.c.l.b16 %v114
    %v372 = vunpack.c.h.b16 %v114
    %v373 = vunpack.c.l.b16 %v115
    %v374 = vunpack.c.h.b16 %v115
    %v375 = vunpack.c.l.b16 %v116
    %v376 = vunpack.c.h.b16 %v116
    %v377 = vunpack.c.l.b16 %v117
    %v378 = vunpack.c.h.b16 %v117
    %v379 = vunpack.c.l.b16 %v118
    %v380 = vunpack.c.h.b16 %v118
    %v381 = vunpack.c.l.b16 %v119
    %v382 = vunpack.c.h.b16 %v119
    %v383 = vunpack.c.l.b16 %v120
    %v384 = vunpack.c.h.b16 %v120
    %v385 = vunpack.c.l.b16 %v121
    %v386 = vunpack.c.h.b16 %v121
    %v387 = vunpack.c.l.b16 %v122
    %v388 = vunpack.c.h.b16 %v122
    %v389 = vunpack.c.l.b16 %v123
    %v390 = vunpack.c.h.b16 %v123
    %v391 = vunpack.c.l.b16 %v124
    %v392 = vunpack.c.h.b16 %v124
    %v393 = vunpack.c.l.b16 %v125
    %v394 = vunpack.c.h.b16 %v125
    %v395 = vunpack.c.l.b16 %v126
    %v396 = vunpack.c.h.b16 %v126
    %v397 = vunpack.c.l.b16 %v127
    %v398 = vunpack.c.h.b16 %v127
    %v399 = vunpack.c.l.b16 %v128
    %v400 = vunpack.c.h.b16 %v128
    %v401 = vunpack.c.l.b16 %v129
    %v402 = vunpack.c.h.b16 %v129
    %v403 = vunpack.c.l.b16 %v130
    %v404 = vunpack.c.h.b16 %v130
    %v405 = vunpack.c.l.b16 %v131
    %v406 = vunpack.c.h.b16 %v131
    %v407 = vunpack.c.l.b16 %v132
    %v408 = vunpack.c.h.b16 %v132
    %v409 = vunpack.c.l.b16 %v133
    %v410 = vunpack.c.h.b16 %v133
    %v411 = vunpack.c.l.b16 %v134
    %v412 = vunpack.c.h.b16 %v134
    %v413 = vunpack.c.l.b16 %v135
    %v414 = vunpack.c.h.b16 %v135
    %v415 = vunpack.c.l.b16 %v136
    %v416 = vunpack.c.h.b16 %v136
    %v417 = vunpack.c.l.b16 %v137
    %v418 = vunpack.c.h.b16 %v137
    %v419 = vunpack.c.l.b16 %v138
    %v420 = vunpack.c.h.b16 %v138
    %v421 = vunpack.c.l.b16 %v139
    %v422 = vunpack.c.h.b16 %v139
    %v423 = vunpack.c.l.b16 %v140
    %v424 = vunpack.c.h.b16 %v140
    %v425 = vunpack.c.l.b16 %v141
    %v426 = vunpack.c.h.b16 %v141
    %v427 = vunpack.c.l.b16 %v142
    %v428 = vunpack.c.h.b16 %v142
    %v429 = vunpack.c.l.b16 %v143
    %v430 = vunpack.c.h.b16 %v143
    %v431 = vunpack.c.l.b16 %v144
    %v432 = vunpack.c.h.b16 %v144
    %v433 = vunpack.c.l.b16 %v145
    %v434 = vunpack.c.h.b16 %v145
    %v435 = vunpack.c.l.b16 %v146
    %v436 = vunpack.c.h.b16 %v146
    %v437 = vunpack.c.l.b16 %v147
    %v438 = vunpack.c.h.b16 %v147
    %v439 = vunpack.c.l.b16 %v148
    %v440 = vunpack.c.h.b16 %v148
    %v441 = vunpack.c.l.b16 %v149
    %v442 = vunpack.c.h.b16 %v149
    %v443 = vunpack.c.l.b16 %v150
    %v444 = vunpack.c.h.b16 %v150
    %v445 = vunpack.c.l.b16 %v151
    %v446 = vunpack.c.h.b16 %v151
    %v447 = vunpack.c.l.b16 %v152
    %v448 = vunpack.c.h.b16 %v152
    %v449 = vunpack.c.l.b16 %v153
    %v450 = vunpack.c.h.b16 %v153
    %v451 = vunpack.c.l.b16 %v154
    %v452 = vunpack.c.h.b16 %v154
    %v453 = vunpack.c.l.b16 %v155
    %v454 = vunpack.c.h.b16 %v155
    %v455 = vunpack.c.l.b16 %v156
    %v456 = vunpack.c.h.b16 %v156
    %v457 = vpack.c.b16 %v267, %v265
    %v458 = vpack.c.b16 %v268, %v266
    %v459 = vpack.c.b16 %v271, %v269
    %v460 = vpack.c.b16 %v272, %v270
    %v461 = vpack.c.b16 %v275, %v273
    %v462 = vpack.c.b16 %v276, %v274
    %v463 = vpack.c.b16 %v279, %v277
    %v464 = vpack.c.b16 %v280, %v278
    %v465 = vpack.c.b16 %v283, %v281
    %v466 = vpack.c.b16 %v284, %v282
    %v467 = vpack.c.b16 %v287, %v285
    %v468 = vpack.c.b16 %v288, %v286
    %v469 = vpack.c.b16 %v291, %v289
    %v470 = vpack.c.b16 %v292, %v290
    %v471 = vpack.c.b16 %v295, %v293
    %v472 = vpack.c.b16 %v296, %v294
    %v473 = vpack.c.b16 %v299, %v297
    %v474 = vpack.c.b16 %v300, %v298
    %v475 = vpack.c.b16 %v303, %v301
    %v476 = vpack.c.b16 %v304, %v302
    %v477 = vpack.c.b16 %v307, %v305
    %v478 = vpack.c.b16 %v308, %v306
    %v479 = vpack.c.b16 %v311, %v309
    %v480 = vpack.c.b16 %v312, %v310
    %v481 = vpack.c.b16 %v315, %v313
    %v482 = vpack.c.b16 %v316, %v314
    %v483 = vpack.c.b16 %v319, %v317
    %v484 = vpack.c.b16 %v320, %v318
    %v485 = vpack.c.b16 %v323, %v321
    %v486 = vpack.c.b16 %v324, %v322
    %v487 = vpack.c.b16 %v327, %v325
    %v488 = vpack.c.b16 %v328, %v326
    %v489 = vpack.c.b16 %v331, %v329
    %v490 = vpack.c.b16 %v332, %v330
    %v491 = vpack.c.b16 %v335, %v333
    %v492 = vpack.c.b16 %v336, %v334
    %v493 = vpack.c.b16 %v339, %v337
    %v494 = vpack.c.b16 %v340, %v338
    %v495 = vpack.c.b16 %v343, %v341
    %v496 = vpack.c.b16 %v344, %v342
    %v497 = vpack.c.b16 %v347, %v345
    %v498 = vpack.c.b16 %v348, %v346
    %v499 = vpack.c.b16 %v351, %v349
    %v500 = vpack.c.b16 %v352, %v350
    %v501 = vpack.c.b16 %v355, %v353
    %v502 = vpack.c.b16 %v356, %v354
    %v503 = vpack.c.b16 %v359, %v357
    %v504 = vpack.c.b16 %v360, %v358
    %v505 = vpack.c.b16 %v363, %v361
    %v506 = vpack.c.b16 %v364, %v362
    %v507 = vpack.c.b16 %v367, %v365
    %v508 = vpack.c.b16 %v368, %v366
    %v509 = vpack.c.b16 %v371, %v369
    %v510 = vpack.c.b16 %v372, %v370
    %v511 = vpack.c.b16 %v375, %v373
    %v512 = vpack.c.b16 %v376, %v374
    %v513 = vpack.c.b16 %v379, %v377
    %v514 = vpack.c.b16 %v380, %v378
    %v515 = vpack.c.b16 %v383, %v381
    %v516 = vpack.c.b16 %v384, %v382
    %v517 = vpack.c.b16 %v387, %v385
    %v518 = vpack.c.b16 %v388, %v386
    %v519 = vpack.c.b16 %v391, %v389
    %v520 = vpack.c.b16 %v392, %v390
    %v521 = vpack.c.b16 %v395, %v393
    %v522 = vpack.c.b16 %v396, %v394
    %v523 = vpack.c.b16 %v399, %v397
    %v524 = vpack.c.b16 %v400, %v398
    %v525 = vpack.c.b16 %v403, %v401
    %v526 = vpack.c.b16 %v404, %v402
    %v527 = vpack.c.b16 %v407, %v405
    %v528 = vpack.c.b16 %v408, %v406
    %v529 = vpack.c.b16 %v411, %v409
    %v530 = vpack.c.b16 %v412, %v410
    %v531 = vpack.c.b16 %v415, %v413
    %v532 = vpack.c.b16 %v416, %v414
    %v533 = vpack.c.b16 %v419, %v417
    %v534 = vpack.c.b16 %v420, %v418
    %v535 = vpack.c.b16 %v423, %v421
    %v536 = vpack.c.b16 %v424, %v422
    %v537 = vpack.c.b16 %v427, %v425
    %v538 = vpack.c.b16 %v428, %v426
    %v539 = vpack.c.b16 %v431, %v429
    %v540 = vpack.c.b16 %v432, %v430
    %v541 = vpack.c.b16 %v435, %v433
    %v542 = vpack.c.b16 %v436, %v434
    %v543 = vpack.c.b16 %v439, %v437
    %v544 = vpack.c.b16 %v440, %v438
    %v545 = vpack.c.b16 %v443, %v441
    %v546 = vpack.c.b16 %v444, %v442
    %v547 = vpack.c.b16 %v447, %v445
    %v548 = vpack.c.b16 %v448, %v446
    %v549 = vpack.c.b16 %v451, %v449
    %v550 = vpack.c.b16 %v452, %v450
    %v551 = vpack.c.b16 %v455, %v453
    %v552 = vpack.c.b16 %v456, %v454
    %649 = vmatprep.subr.bf16.mxu0 %v458
    %650 = vmatpush1.bf16.msra.mxu0 %v457
    %651 = vmatprep.subr.bf16.mxu0 %v460
    %652 = vmatpush1.bf16.msra.mxu0 %v459
    %653 = vmatprep.subr.bf16.mxu0 %v462
    %654 = vmatpush1.bf16.msra.mxu0 %v461
    %655 = vmatprep.subr.bf16.mxu0 %v464
    %656 = vmatpush1.bf16.msra.mxu0 %v463
    %657 = vmatprep.subr.bf16.mxu0 %v466
    %658 = vmatpush1.bf16.msra.mxu0 %v465
    %659 = vmatprep.subr.bf16.mxu0 %v468
    %660 = vmatpush1.bf16.msra.mxu0 %v467
    %661 = vmatprep.subr.bf16.mxu0 %v470
    %662 = vmatpush1.bf16.msra.mxu0 %v469
    %663 = vmatprep.subr.bf16.mxu0 %v472
    %664 = vmatpush1.bf16.msra.mxu0 %v471
    %665 = vmatprep.subr.bf16.mxu0 %v474
    %666 = vmatpush1.bf16.msra.mxu0 %v473
    %667 = vmatprep.subr.bf16.mxu0 %v476
    %668 = vmatpush1.bf16.msra.mxu0 %v475
    %669 = vmatprep.subr.bf16.mxu0 %v478
    %670 = vmatpush1.bf16.msra.mxu0 %v477
    %671 = vmatprep.subr.bf16.mxu0 %v480
    %672 = vmatpush1.bf16.msra.mxu0 %v479
    %673 = vmatprep.subr.bf16.mxu0 %v482
    %674 = vmatpush1.bf16.msra.mxu0 %v481
    %675 = vmatprep.subr.bf16.mxu0 %v484
    %676 = vmatpush1.bf16.msra.mxu0 %v483
    %677 = vmatprep.subr.bf16.mxu0 %v486
    %678 = vmatpush1.bf16.msra.mxu0 %v485
    %679 = vmatprep.subr.bf16.mxu0 %v488
    %680 = vmatpush1.bf16.msra.mxu0 %v487
    %681 = vmatprep.mubr.bf16.mxu0 %v56
    %682 = vmatmul.mubr.bf16.gmra.mrb[0].mxu0 %v55
    %v683 = vpop.f32.mrb[0].mxu0
    %v684 = vadd.f32 %v162, %v683
    %v685 = vpop.f32.mrb[0].mxu0
    %v686 = vadd.f32 %v166, %v685
    %v687 = vpop.f32.mrb[0].mxu0
    %v688 = vadd.f32 %v162, %v687
    %v689 = vpop.f32.mrb[0].mxu0
    %v690 = vadd.f32 %v166, %v689
    %691 = vdwg.mxu0
    %692 = vmatprep.subr.bf16.mxu0 %v490
    %693 = vmatpush1.bf16.msra.mxu0 %v489
    %694 = vmatprep.subr.bf16.mxu0 %v492
    %695 = vmatpush1.bf16.msra.mxu0 %v491
    %696 = vmatprep.subr.bf16.mxu0 %v494
    %697 = vmatpush1.bf16.msra.mxu0 %v493
    %698 = vmatprep.subr.bf16.mxu0 %v496
    %699 = vmatpush1.bf16.msra.mxu0 %v495
    %700 = vmatprep.subr.bf16.mxu0 %v498
    %701 = vmatpush1.bf16.msra.mxu0 %v497
    %702 = vmatprep.subr.bf16.mxu0 %v500
    %703 = vmatpush1.bf16.msra.mxu0 %v499
    %704 = vmatprep.subr.bf16.mxu0 %v502
    %705 = vmatpush1.bf16.msra.mxu0 %v501
    %706 = vmatprep.subr.bf16.mxu0 %v504
    %707 = vmatpush1.bf16.msra.mxu0 %v503
    %708 = vmatprep.subr.bf16.mxu0 %v506
    %709 = vmatpush1.bf16.msra.mxu0 %v505
    %710 = vmatprep.subr.bf16.mxu0 %v508
    %711 = vmatpush1.bf16.msra.mxu0 %v507
    %712 = vmatprep.subr.bf16.mxu0 %v510
    %713 = vmatpush1.bf16.msra.mxu0 %v509
    %714 = vmatprep.subr.bf16.mxu0 %v512
    %715 = vmatpush1.bf16.msra.mxu0 %v511
    %716 = vmatprep.subr.bf16.mxu0 %v514
    %717 = vmatpush1.bf16.msra.mxu0 %v513
    %718 = vmatprep.subr.bf16.mxu0 %v516
    %719 = vmatpush1.bf16.msra.mxu0 %v515
    %720 = vmatprep.subr.bf16.mxu0 %v518
    %721 = vmatpush1.bf16.msra.mxu0 %v517
    %722 = vmatprep.subr.bf16.mxu0 %v520
    %723 = vmatpush1.bf16.msra.mxu0 %v519
    %724 = vmatprep.mubr.bf16.mxu0 %v58
    %725 = vmatmul.mubr.bf16.gmra.mrb[0].mxu0 %v57
    %v726 = vpop.f32.mrb[0].mxu0
    %v727 = vadd.f32 %v684, %v726
    %v728 = vpop.f32.mrb[0].mxu0
    %v729 = vadd.f32 %v686, %v728
    %v730 = vpop.f32.mrb[0].mxu0
    %v731 = vadd.f32 %v688, %v730
    %v732 = vpop.f32.mrb[0].mxu0
    %v733 = vadd.f32 %v690, %v732
    %734 = vdwg.mxu0
    %735 = vmatprep.subr.bf16.mxu0 %v522
    %736 = vmatpush1.bf16.msra.mxu0 %v521
    %737 = vmatprep.subr.bf16.mxu0 %v524
    %738 = vmatpush1.bf16.msra.mxu0 %v523
    %739 = vmatprep.subr.bf16.mxu0 %v526
    %740 = vmatpush1.bf16.msra.mxu0 %v525
    %741 = vmatprep.subr.bf16.mxu0 %v528
    %742 = vmatpush1.bf16.msra.mxu0 %v527
    %743 = vmatprep.subr.bf16.mxu0 %v530
    %744 = vmatpush1.bf16.msra.mxu0 %v529
    %745 = vmatprep.subr.bf16.mxu0 %v532
    %746 = vmatpush1.bf16.msra.mxu0 %v531
    %747 = vmatprep.subr.bf16.mxu0 %v534
    %748 = vmatpush1.bf16.msra.mxu0 %v533
    %749 = vmatprep.subr.bf16.mxu0 %v536
    %750 = vmatpush1.bf16.msra.mxu0 %v535
    %751 = vmatprep.subr.bf16.mxu0 %v538
    %752 = vmatpush1.bf16.msra.mxu0 %v537
    %753 = vmatprep.subr.bf16.mxu0 %v540
    %754 = vmatpush1.bf16.msra.mxu0 %v539
    %755 = vmatprep.subr.bf16.mxu0 %v542
    %756 = vmatpush1.bf16.msra.mxu0 %v541
    %757 = vmatprep.subr.bf16.mxu0 %v544
    %758 = vmatpush1.bf16.msra.mxu0 %v543
    %759 = vmatprep.subr.bf16.mxu0 %v546
    %760 = vmatpush1.bf16.msra.mxu0 %v545
    %761 = vmatprep.subr.bf16.mxu0 %v548
    %762 = vmatpush1.bf16.msra.mxu0 %v547
    %763 = vmatprep.subr.bf16.mxu0 %v550
    %764 = vmatpush1.bf16.msra.mxu0 %v549
    %765 = vmatprep.subr.bf16.mxu0 %v552
    %766 = vmatpush1.bf16.msra.mxu0 %v551
    %767 = vmatprep.mubr.bf16.mxu0 %v60
    %768 = vmatmul.mubr.bf16.gmra.mrb[0].mxu0 %v59
    %v769 = vpop.f32.mrb[0].mxu0
    %v770 = vadd.f32 %v727, %v769
    %v771 = vpop.f32.mrb[0].mxu0
    %v772 = vadd.f32 %v729, %v771
    %v773 = vpop.f32.mrb[0].mxu0
    %v774 = vadd.f32 %v731, %v773
    %v775 = vpop.f32.mrb[0].mxu0
    %v776 = vadd.f32 %v733, %v775
    %777 = vdwg.mxu0
    %778 = vst [vmem:[#allocation7] sm:$0xff] %v770
    %779 = vst [vmem:[#allocation7 + $0x8] sm:$0xff] %v772
    %780 = vst [vmem:[#allocation7 + $0x10] sm:$0xff] %v774
    %781 = vst [vmem:[#allocation7 + $0x18] sm:$0xff] %v776
    // Predicated region
    $region22: #{tpu_custom_call.1} parent=1 // pred_check
      _
    $region23: #{tpu_custom_call.1} parent=1 // pred_check_branch
      %783 = sbr.rel (0) target = $region25
    $region24: #{tpu_custom_call.1} parent=1 // pred_region
      %s785 = ssub.s32 512, 512
      %786 = vsyncadd [#allocation4], %s785
      %s787 = sshll.u32 [#allocation7], 4
      %s788 = int_to_ptr.vmem [resolvable:$true] %s787
      %793 = dma.vmem_to_hbm [thread:$0]  %s788, 512, %s3, [#allocation4], 256, 256, 16
    $region25: #{tpu_custom_call.1} parent=1 // pred_fallthru
      _
    // Predicated region
    $region26: #{tpu_custom_call.1} parent=1 // pred_check
      _
    $region27: #{tpu_custom_call.1} parent=1 // pred_check_branch
      %795 = sbr.rel (0) target = $region29
    $region28: #{tpu_custom_call.1} parent=1 // pred_region
      %796 = dma.done [#allocation4], 512
    $region29: #{tpu_custom_call.1} parent=1 // pred_fallthru
      _
    %797 = vsyncpa [#allocation3], 1
    %798 = vsyncpa [#allocation6], 1
    %799 = vsyncpa [#allocation4], 1

</llo_original>
